<compile_context>
chip_gen: v6e
topology: v6e:2x2x1
jax: 0.10.0
libtpu: 0.0.40
codegen_flags: <defaults>
</compile_context>

<pallas_src>
import functools

import jax
import jax.numpy as jnp
from jax import lax
from jax.experimental import pallas as pl
from jax.experimental.pallas import tpu as pltpu


# ---------------------------------------------------------------------------
# Kernel
# ---------------------------------------------------------------------------

def _rope_cache_kernel(invf_ref, cos_ref, sin_ref, *,
                       pos_per_row: int, dims_per_pos: int, mscale: float):
    """Writes one (tile_rows, width) tile of the flat cos/sin caches.

    The caches are the row-major (positions, head_dim) arrays viewed flat as
    (rows, width), width a multiple of 128 (lane-dense stores).  A flat element
    at (row r, lane c) corresponds to
        position   = r * pos_per_row + c // dims_per_pos
        freq index = c %  dims_per_pos
    `invf_ref` is a precomputed (1, width) row holding inv_freq_full[c % dims].
    """
    tile_rows, width = cos_ref.shape
    row = lax.broadcasted_iota(jnp.int32, (tile_rows, width), 0)
    lane = lax.broadcasted_iota(jnp.int32, (tile_rows, width), 1)
    grow = pl.program_id(0) * tile_rows + row            # global flat row

    if dims_per_pos == width:                            # one position per row
        pos_idx = grow
    else:                                                # dims_per_pos divides 128 => power of two
        shift = dims_per_pos.bit_length() - 1
        pos_idx = grow * pos_per_row + (lane >> shift)

    # NOTE: positions are exact in f32 only up to 2^24 (same limitation as the
    # PyTorch float32 reference cache).
    pos = pos_idx.astype(jnp.float32)
    freqs = pos * invf_ref[...]                          # (tile_rows, width), f32, VPU

    c = jnp.cos(freqs)
    if mscale != 1.0:                                    # static Python check; 1.0 emits nothing
        c = c * mscale
    cos_ref[...] = c.astype(cos_ref.dtype)               # retire cos before sin starts

    s = jnp.sin(freqs)
    if mscale != 1.0:
        s = s * mscale
    sin_ref[...] = s.astype(sin_ref.dtype)


# ---------------------------------------------------------------------------
# Cache builder
# ---------------------------------------------------------------------------

def _round_up(x: int, m: int) -> int:
    return ((x + m - 1) // m) * m


def _choose_tile(rows_needed: int, cap_rows: int):
    """Pick (tile_rows, grid_steps).

    tile_rows % 8 == 0 (sublane constraint), tile_rows * grid >= rows_needed
    with an exact tiling (no partial trailing block), >= 2 grid steps whenever
    there is enough work (v7x megacore sharding), tiles as large as possible up
    to cap_rows (per-step overhead amortization on single-TC v5e/v6e).
    """
    if rows_needed <= 8:
        return 8, 1
    grid = max(2, -(-rows_needed // cap_rows))
    tile = _round_up(-(-rows_needed // grid), 8)
    grid = -(-rows_needed // tile)
    return tile, grid


def build_rope_cache(max_seq_len_cached: int, dim: int, rope_theta: float,
                     mscale: float = 1.0, dtype=jnp.float32):
    """Builds (_cos_cached, _sin_cached), each [max_seq_len_cached, dim], in `dtype`."""
    S, D = int(max_seq_len_cached), int(dim)

    # inv_freq = 1 / theta ** (arange(0, D, 2) / D), interleave-expanded so that
    # inv_freq_full[2i] == inv_freq_full[2i + 1] == inv_freq[i] (equivalent to
    # torch.stack((freqs, freqs), -1).reshape(..., -1) on the positions side).
    inv_freq = 1.0 / (rope_theta ** (jnp.arange(0, D, 2, dtype=jnp.float32) / D))
    inv_freq_full = jnp.repeat(inv_freq, 2)[:D]

    if D <= 128 and 128 % D == 0:
        # Lane-packed path: the row-major (positions, D) cache viewed flat as
        # (rows, 128); each 128-lane row holds 128 // D consecutive positions.
        width = 128
        dims_per_pos = D
        pos_per_row = 128 // D
        lane_invf = jnp.tile(inv_freq_full, pos_per_row)          # (128,)
    else:
        # Row-per-position path, padded to a lane-dense multiple of 128 lanes;
        # padded lanes get inv_freq = 0 (cos=1, sin=0) and are sliced off once.
        width = _round_up(D, 128)
        dims_per_pos = width
        pos_per_row = 1
        pad_lanes = width - D
        if pad_lanes:
            lane_invf = jnp.concatenate(
                [inv_freq_full, jnp.zeros((pad_lanes,), jnp.float32)])
        else:
            lane_invf = inv_freq_full

    rows_needed = -(-S // pos_per_row)
    # ~1 MiB f32 per output block; keeps double-buffered outputs + temporaries
    # well under the scoped-VMEM default on v5e/v6e/v7x.
    cap_rows = max(8, ((262144 // width) // 8) * 8)
    tile_rows, grid_steps = _choose_tile(rows_needed, cap_rows)
    rows_total = tile_rows * grid_steps                            # exact tiling
    n_elems = rows_total * width
    dt = jnp.dtype(dtype)

    kernel = functools.partial(_rope_cache_kernel, pos_per_row=pos_per_row,
                               dims_per_pos=dims_per_pos, mscale=float(mscale))
    cos_flat, sin_flat = pl.pallas_call(
        kernel,
        out_shape=(jax.ShapeDtypeStruct((rows_total, width), dt),
                   jax.ShapeDtypeStruct((rows_total, width), dt)),
        grid=(grid_steps,),
        in_specs=[pl.BlockSpec((1, width), lambda i: (0, 0))],
        out_specs=(pl.BlockSpec((tile_rows, width), lambda i: (i, 0)),
                   pl.BlockSpec((tile_rows, width), lambda i: (i, 0))),
        compiler_params=pltpu.CompilerParams(
            dimension_semantics=("parallel",)),
        cost_estimate=pl.CostEstimate(
            flops=int(8 * n_elems),
            transcendentals=int(2 * n_elems),
            bytes_accessed=int(2 * n_elems * dt.itemsize + 4 * width)),
    )(lane_invf.reshape(1, width))

    if pos_per_row > 1:
        # Row-major contiguity preserved -> effectively free reshape; the [:S]
        # slice only trims padding rows added for an exact grid tiling.
        cos_c = cos_flat.reshape(rows_total * pos_per_row, D)[:S]
        sin_c = sin_flat.reshape(rows_total * pos_per_row, D)[:S]
    else:
        cos_c = cos_flat[:S, :D]
        sin_c = sin_flat[:S, :D]
    return cos_c, sin_c


# ---------------------------------------------------------------------------
# Module
# ---------------------------------------------------------------------------

class RotaryEmbedding1DV1:
    """JAX/Pallas port of the PyTorch RotaryEmbedding1DV1.

    forward(x, seq_len) -> (cos[:seq_len], sin[:seq_len]) in x.dtype.  The
    cos/sin caches are built lazily per dtype by the Pallas kernel with mscale
    and the output-dtype cast fused in, so forward() only slices.
    """

    def __init__(self, dim: int, n_heads: int, rope_theta: float,
                 head_dim: int, max_seq_len_cached: int):
        self.mscale = 1.0
        self.dim = head_dim if head_dim else dim // n_heads
        self.rope_theta = rope_theta
        self.max_seq_len_cached = max_seq_len_cached
        # Lazy per-dtype cache: nothing is built until the first forward call,
        # so a bf16-only model never pays for an f32 cache (HBM or launch time).
        self._cache = {}

    def _get_cache(self, dtype):
        key = jnp.dtype(dtype)
        if key not in self._cache:
            self._cache[key] = build_rope_cache(
                self.max_seq_len_cached, self.dim, self.rope_theta,
                self.mscale, key)
        return self._cache[key]

    def __call__(self, x, seq_len: int):
        cos_cached, sin_cached = self._get_cache(x.dtype)
        return cos_cached[:seq_len], sin_cached[:seq_len]


if __name__ == "__main__":
    # Small, deterministic config.
    head_dim = 32
    n_heads = 4
    dim = head_dim * n_heads
    rope_theta = 10000.0
    max_seq_len_cached = 16
    seq_len = 8

    key = jax.random.PRNGKey(0)
    # x: [batch, n_heads, seq, head_dim]; only its dtype matters to forward().
    x = jax.random.normal(key, (2, n_heads, seq_len, head_dim), dtype=jnp.float32)

    rope = RotaryEmbedding1DV1(dim, n_heads, rope_theta, head_dim,
                               max_seq_len_cached)
    cos, sin = rope(x, seq_len)
    cos = jax.block_until_ready(cos)
    sin = jax.block_until_ready(sin)

    # Pure-JAX reference (mirrors the PyTorch __init__ / forward exactly).
    inv_freq = 1.0 / (rope_theta ** (jnp.arange(0, head_dim, 2, dtype=jnp.float32)
                                     / head_dim))
    pos = jnp.arange(max_seq_len_cached, dtype=jnp.float32)
    freqs = pos[:, None] * inv_freq[None, :]
    emb = jnp.stack((freqs, freqs), axis=-1).reshape(max_seq_len_cached, head_dim)
    ref_cos = jnp.cos(emb)[:seq_len]
    ref_sin = jnp.sin(emb)[:seq_len]

    assert cos.shape == (seq_len, head_dim) and sin.shape == (seq_len, head_dim)
    assert cos.dtype == x.dtype and sin.dtype == x.dtype
    assert jnp.allclose(cos, ref_cos.astype(x.dtype), atol=1e-5, rtol=1e-5)
    assert jnp.allclose(sin, ref_sin.astype(x.dtype), atol=1e-5, rtol=1e-5)

    # bf16 path: cache built directly in bf16 (cast fused into the kernel).
    x_bf16 = x.astype(jnp.bfloat16)
    cos_b, sin_b = rope(x_bf16, seq_len)
    cos_b = jax.block_until_ready(cos_b)
    sin_b = jax.block_until_ready(sin_b)
    assert cos_b.dtype == jnp.bfloat16 and sin_b.dtype == jnp.bfloat16
    assert cos_b.shape == (seq_len, head_dim)
    assert jnp.allclose(cos_b.astype(jnp.float32), ref_cos, atol=2e-2)
    assert jnp.allclose(sin_b.astype(jnp.float32), ref_sin, atol=2e-2)

    print("KERNEL_OK")
</pallas_src>

<mosaic_0001>
module attributes {stable_mosaic.version = 11 : i64} {
  func.func @_rope_cache_kernel(%arg0: i32, %arg1: memref<1x128xf32, #tpu.memory_space<vmem>>, %arg2: memref<8x128xf32, #tpu.memory_space<vmem>>, %arg3: memref<8x128xf32, #tpu.memory_space<vmem>>) attributes {dimension_semantics = [#tpu.dimension_semantics<parallel>], iteration_bounds = array<i64: 1>, scalar_prefetch = 0 : i64, scratch_operands = 0 : i64, tpu.core_type = #tpu.core_type<tc>, window_params = [{pipeline_mode = #tpu.pipeline_mode<synchronous>, transform_indices = @transform_0, window_bounds = array<i64: 1, 128>}, {transform_indices = @transform_1, window_bounds = array<i64: 8, 128>}, {transform_indices = @transform_2, window_bounds = array<i64: 8, 128>}]} {
    %0 = tpu.iota {dimensions = array<i32: 0>} : vector<8x128xi32>
    %1 = tpu.iota {dimensions = array<i32: 1>} : vector<8x128xi32>
    %c8_i32 = arith.constant 8 : i32
    %2 = arith.muli %arg0, %c8_i32 : i32
    %3 = vector.broadcast %2 : i32 to vector<8x128xi32>
    %4 = arith.addi %3, %0 : vector<8x128xi32>
    %c4_i32 = arith.constant 4 : i32
    %5 = vector.broadcast %c4_i32 : i32 to vector<8x128xi32>
    %6 = arith.muli %4, %5 : vector<8x128xi32>
    %c5_i32 = arith.constant 5 : i32
    %7 = vector.broadcast %c5_i32 : i32 to vector<8x128xi32>
    %8 = arith.shrsi %1, %7 : vector<8x128xi32>
    %9 = arith.addi %6, %8 : vector<8x128xi32>
    %10 = arith.sitofp %9 : vector<8x128xi32> to vector<8x128xf32>
    %c0 = arith.constant 0 : index
    %c0_0 = arith.constant 0 : index
    %11 = vector.load %arg1[%c0, %c0_0] : memref<1x128xf32, #tpu.memory_space<vmem>>, vector<1x128xf32>
    %12 = vector.broadcast %11 : vector<1x128xf32> to vector<8x128xf32>
    %13 = arith.mulf %10, %12 : vector<8x128xf32>
    %14 = math.cos %13 : vector<8x128xf32>
    %c0_1 = arith.constant 0 : index
    %c0_2 = arith.constant 0 : index
    %15 = vector.load %arg2[%c0_1, %c0_2] : memref<8x128xf32, #tpu.memory_space<vmem>>, vector<8x128xf32>
    tpu.vector_store %arg2[%c0_1, %c0_2], %14 {strides = array<i32>} : memref<8x128xf32, #tpu.memory_space<vmem>>, vector<8x128xf32>,
    %16 = math.sin %13 : vector<8x128xf32>
    %c0_3 = arith.constant 0 : index
    %c0_4 = arith.constant 0 : index
    %17 = vector.load %arg3[%c0_3, %c0_4] : memref<8x128xf32, #tpu.memory_space<vmem>>, vector<8x128xf32>
    tpu.vector_store %arg3[%c0_3, %c0_4], %16 {strides = array<i32>} : memref<8x128xf32, #tpu.memory_space<vmem>>, vector<8x128xf32>,
    return
  }
  func.func @transform_0(%arg0: i32) -> (i32, i32) {
    %c0_i32 = arith.constant 0 : i32
    %c0_i32_0 = arith.constant 0 : i32
    %c0_i32_1 = arith.constant 0 : i32
    return %c0_i32, %c0_i32_0 : i32, i32
  }
  func.func @transform_1(%arg0: i32) -> (i32, i32) {
    %c0_i32 = arith.constant 0 : i32
    %c0_i32_0 = arith.constant 0 : i32
    return %arg0, %c0_i32 : i32, i32
  }
  func.func @transform_2(%arg0: i32) -> (i32, i32) {
    %c0_i32 = arith.constant 0 : i32
    %c0_i32_0 = arith.constant 0 : i32
    return %arg0, %c0_i32 : i32, i32
  }
}

</mosaic_0001>

<llo_original>
// kernel: tpu_custom_call.1
$region0: #{tpu_custom_call.1}
  #allocation0 [shape = 'u32[]', space=smem, size = 0x4, offset = 0x4, fixed_abs, tag = 'smem constant byte address 0x4 - core index']
  #allocation1 [shape = 'u32[144,128]{1,0:T(1,128)}', space=vmem, size = 0x12000, scoped, tag = 'internal scratch']
  %s0 = inlined_call_operand.hbm [shape: f32[1,128], index: 0, kind: input, shape index: {}]
  %s1 = inlined_call_operand.hbm [shape: f32[8,128], index: 1, kind: output, shape index: {0}]
  %s2 = inlined_call_operand.hbm [shape: f32[8,128], index: 2, kind: output, shape index: {1}]
  %3 = xla_tuple %s1, %s2
  %s4 = sld [smem:[#allocation0]]
  $region26: #{tpu_custom_call.1} parent=0
    _
  %s6 = ssub.s32 1, %s4
  %s7 = scalar_select 0, %s6, %s4
  $region1: #{tpu_custom_call.1} parent=0
    #allocation2 [shape = 'u8[512]{0}', space=vmem, size = 0x400, scoped, tag = 'input window, operand 0, single buffered']
    #allocation3 [shape = 's32[1]{0}', space=sflag, size = 0x4, scoped, tag = 'scoped memory for tpu_custom_call.1']
    #allocation4 [shape = 's32[1]{0}', space=sflag, size = 0x4, scoped, tag = 'scoped memory for tpu_custom_call.1']
    #allocation5 [shape = 'u8[4096]{0}', space=vmem, size = 0x1000, scoped, tag = 'output window, operand 0, single buffered']
    #allocation6 [shape = 'u8[4096]{0}', space=vmem, size = 0x1000, scoped, tag = 'output window, operand 1, single buffered']
    #allocation7 [shape = 's32[1]{0}', space=sflag, size = 0x4, scoped, tag = 'scoped memory for tpu_custom_call.1']
    %8 = vsyncpa [#allocation3], 0
    %9 = vsyncpa [#allocation4], 0
    %10 = vsyncpa [#allocation7], 0
    // Predicated region
    $region2: #{tpu_custom_call.1} parent=1 // pred_check
      _
    $region3: #{tpu_custom_call.1} parent=1 // pred_check_branch
      %12 = sbr.rel (0) target = $region5
    $region4: #{tpu_custom_call.1} parent=1 // pred_region
      %s14 = ssub.s32 16, 16
      %15 = vsyncadd [#allocation3], %s14
      %s17 = sshll.u32 [#allocation2], 4
      %s18 = int_to_ptr.vmem [resolvable:$true] %s17
      %20 = dma.hbm_to_vmem [thread:$0]  %s0, 16, %s18, [#allocation3]
    $region5: #{tpu_custom_call.1} parent=1 // pred_fallthru
      _
    // Predicated region
    $region6: #{tpu_custom_call.1} parent=1 // pred_check
      _
    $region7: #{tpu_custom_call.1} parent=1 // pred_check_branch
      %22 = sbr.rel (0) target = $region9
    $region8: #{tpu_custom_call.1} parent=1 // pred_region
      %23 = dma.done [#allocation3], 16
    $region9: #{tpu_custom_call.1} parent=1 // pred_fallthru
      _
    %v24 = vlaneseq
    %v25 = vshrl.u32 %v24, 7
    %v26 = vlaneseq
    %v27 = vand.u32 %v26, 127
    %s28 = smul.u32 0, 8
    %v29 = vstv %s28
    %v30 = vadd.s32 %v29, %v25
    %v31 = vmul.u32 %v30, 4
    %v32 = vshra.s32 %v27, 5
    %v33 = vadd.s32 %v31, %v32
    %v34 = vcvt.s32.f32 %v33
    %v35 = vld [vmem:[#allocation2] sm:$0x1]
    %v37 = vlaneseq
    %v38 = vshrl.u32 %v37, 7
    %v39 = vsub.s32 0, %v38
    %v40 = vrot.slane %v35, %v39
    %v42 = vmul.f32 %v34, %v40
    %v43 = vand.u32 2147483647, %v42
    %vm44 = vcmp.le.f32.partialorder %v43, 0.7853982
    %vm45 = vcmp.lt.s32.totalorder %v42, 0
    %v46 = vand.u32 %v42, 2139095040
    %v47 = vshrl.u32 %v46, 23
    %v48 = vsub.s32 %v47, 127
    %v49 = vand.u32 2147483647, %v42
    %v50 = vand.u32 %v49, 8388607
    %v51 = vor.u32 %v50, 8388608
    %v52 = vsub.s32 0, %v51
    %v53 = vadd.s32 %v48, 1
    %vm54 = vcmp.gt.s32.totalorder %v53, 0
    %v55 = vsel %vm54, %v53, 0
    %v56 = vshrl.u32 %v55, 5
    %v57 = vand.u32 %v55, 31
    %v58 = vsub.s32 32, %v57
    %v59 = vshrl.u32 683565275, %v58
    %v60 = vshll.u32 683565275, %v57
    %v61 = vshrl.u32 2475754826, %v58
    %v62 = vor.u32 %v60, %v61
    %v63 = vshll.u32 2475754826, %v57
    %v64 = vshrl.u32 2131351028, %v58
    %v65 = vor.u32 %v63, %v64
    %v66 = vshll.u32 2131351028, %v57
    %v67 = vshrl.u32 2102212464, %v58
    %v68 = vor.u32 %v66, %v67
    %v69 = vshll.u32 2102212464, %v57
    %v70 = vshrl.u32 920167782, %v58
    %v71 = vor.u32 %v69, %v70
    %v72 = vshll.u32 920167782, %v57
    %v73 = vshrl.u32 1326507024, %v58
    %v74 = vor.u32 %v72, %v73
    %vm75 = vcmp.lt.s32.totalorder %v56, 1
    %vm76 = vcmp.lt.s32.totalorder %v56, 2
    %vm77 = vcmp.lt.s32.totalorder %v56, 3
    %vm78 = vcmp.lt.s32.totalorder %v56, 4
    %v79 = vsel %vm75, %v59, %v62
    %v80 = vsel %vm78, %v68, 2102212464
    %v81 = vsel %vm77, %v65, %v80
    %v82 = vsel %vm76, %v79, %v81
    %v83 = vsel %vm75, %v62, %v65
    %v84 = vsel %vm78, %v71, 920167782
    %v85 = vsel %vm77, %v68, %v84
    %v86 = vsel %vm76, %v83, %v85
    %v87 = vsel %vm75, %v65, %v68
    %v88 = vsel %vm78, %v74, 1326507024
    %v89 = vsel %vm77, %v71, %v88
    %v90 = vsel %vm76, %v87, %v89
    %v91 = vshll.u32 %v51, 8
    %v92 = vmul.u32.u64.compose %v91, %v90
    %v93 = vextract.low.u32 %v92
    %v94 = vextract.high.u32 %v92
    %v95 = vmul.u32.u64.compose %v91, %v86
    %v96 = vextract.low.u32 %v95
    %v97 = vextract.high.u32 %v95
    %v98 = vmul.u32 %v91, %v82
    %v99 = vadd.s32 %v94, %v96
    %vm100 = vc.u32 %v94, %v96
    %v101 = vadd.s32 %v97, 1
    %v102 = vsel %vm100, %v101, %v97
    %v103 = vadd.s32 %v98, %v102
    %v104 = vadd.s32 %v103, 536870912
    %v105 = vshrl.u32 %v104, 30
    %v106 = vshll.u32 %v105, 30
    %v107 = vsub.s32 %v103, %v106
    %vm108 = vcmp.lt.s32.totalorder %v107, 0
    %v109 = vsub.s32 0, %v107
    %v110 = vsel %vm108, %v109, %v107
    %v111 = vclz %v110
    %v112 = vsub.s32 %v111, 2
    %vm113 = vcmp.gt.s32.totalorder 0, %v112
    %v114 = vsel %vm113, 0, %v112
    %v115 = vsub.s32 32, %v114
    %v116 = vshll.u32 %v107, %v114
    %v117 = vshrl.u32 %v99, %v115
    %v118 = vor.u32 %v116, %v117
    %v119 = vsub.s32 4294967266, %v114
    %v120 = vadd.s32 %v119, 127
    %v121 = vshll.u32 %v120, 23
    %v122 = vor.u32 4788187, %v121
    %v123 = vand.u32 2147483647, %v122
    %v125 = vcvt.s32.f32 %v118
    %v126 = vmul.f32 %v125, %v123
    %v127 = vxor.u32 %v126, 2147483648
    %v128 = vsel %vm45, %v127, %v126
    %v129 = vsub.s32 4, %v105
    %v130 = vsel %vm45, %v129, %v105
    %v131 = vsel %vm44, %v42, %v128
    %v132 = vsel %vm44, 0, %v130
    %v133 = vcosq.f32.pop %v131
    %v134 = vsinq.f32.pop %v131
    %vm135 = vweird.f32 %v42
    %v136 = vand.u32 %v132, 3
    %vm137 = vcmp.lt.s32.totalorder %v136, 2
    %vm138 = vcmp.eq.s32.totalorder %v136, 0
    %v139 = vxor.u32 %v134, 2147483648
    %v140 = vsel %vm138, %v133, %v139
    %vm141 = vcmp.eq.s32.totalorder %v136, 2
    %v142 = vxor.u32 %v133, 2147483648
    %v143 = vsel %vm141, %v142, %v134
    %v144 = vsel %vm137, %v140, %v143
    %v145 = vsel %vm135, nan, %v144
    %146 = vst [vmem:[#allocation5] sm:$0xff] %v145
    %v147 = vand.u32 2147483647, %v42
    %vm148 = vcmp.le.f32.partialorder %v147, 0.7853982
    %vm149 = vcmp.lt.s32.totalorder %v42, 0
    %v150 = vand.u32 %v42, 2139095040
    %v151 = vshrl.u32 %v150, 23
    %v152 = vsub.s32 %v151, 127
    %v153 = vand.u32 2147483647, %v42
    %v154 = vand.u32 %v153, 8388607
    %v155 = vor.u32 %v154, 8388608
    %v156 = vsub.s32 0, %v155
    %v157 = vadd.s32 %v152, 1
    %vm158 = vcmp.gt.s32.totalorder %v157, 0
    %v159 = vsel %vm158, %v157, 0
    %v160 = vshrl.u32 %v159, 5
    %v161 = vand.u32 %v159, 31
    %v162 = vsub.s32 32, %v161
    %v163 = vshrl.u32 683565275, %v162
    %v164 = vshll.u32 683565275, %v161
    %v165 = vshrl.u32 2475754826, %v162
    %v166 = vor.u32 %v164, %v165
    %v167 = vshll.u32 2475754826, %v161
    %v168 = vshrl.u32 2131351028, %v162
    %v169 = vor.u32 %v167, %v168
    %v170 = vshll.u32 2131351028, %v161
    %v171 = vshrl.u32 2102212464, %v162
    %v172 = vor.u32 %v170, %v171
    %v173 = vshll.u32 2102212464, %v161
    %v174 = vshrl.u32 920167782, %v162
    %v175 = vor.u32 %v173, %v174
    %v176 = vshll.u32 920167782, %v161
    %v177 = vshrl.u32 1326507024, %v162
    %v178 = vor.u32 %v176, %v177
    %vm179 = vcmp.lt.s32.totalorder %v160, 1
    %vm180 = vcmp.lt.s32.totalorder %v160, 2
    %vm181 = vcmp.lt.s32.totalorder %v160, 3
    %vm182 = vcmp.lt.s32.totalorder %v160, 4
    %v183 = vsel %vm179, %v163, %v166
    %v184 = vsel %vm182, %v172, 2102212464
    %v185 = vsel %vm181, %v169, %v184
    %v186 = vsel %vm180, %v183, %v185
    %v187 = vsel %vm179, %v166, %v169
    %v188 = vsel %vm182, %v175, 920167782
    %v189 = vsel %vm181, %v172, %v188
    %v190 = vsel %vm180, %v187, %v189
    %v191 = vsel %vm179, %v169, %v172
    %v192 = vsel %vm182, %v178, 1326507024
    %v193 = vsel %vm181, %v175, %v192
    %v194 = vsel %vm180, %v191, %v193
    %v195 = vshll.u32 %v155, 8
    %v196 = vmul.u32.u64.compose %v195, %v194
    %v197 = vextract.low.u32 %v196
    %v198 = vextract.high.u32 %v196
    %v199 = vmul.u32.u64.compose %v195, %v190
    %v200 = vextract.low.u32 %v199
    %v201 = vextract.high.u32 %v199
    %v202 = vmul.u32 %v195, %v186
    %v203 = vadd.s32 %v198, %v200
    %vm204 = vc.u32 %v198, %v200
    %v205 = vadd.s32 %v201, 1
    %v206 = vsel %vm204, %v205, %v201
    %v207 = vadd.s32 %v202, %v206
    %v208 = vadd.s32 %v207, 536870912
    %v209 = vshrl.u32 %v208, 30
    %v210 = vshll.u32 %v209, 30
    %v211 = vsub.s32 %v207, %v210
    %vm212 = vcmp.lt.s32.totalorder %v211, 0
    %v213 = vsub.s32 0, %v211
    %v214 = vsel %vm212, %v213, %v211
    %v215 = vclz %v214
    %v216 = vsub.s32 %v215, 2
    %vm217 = vcmp.gt.s32.totalorder 0, %v216
    %v218 = vsel %vm217, 0, %v216
    %v219 = vsub.s32 32, %v218
    %v220 = vshll.u32 %v211, %v218
    %v221 = vshrl.u32 %v203, %v219
    %v222 = vor.u32 %v220, %v221
    %v223 = vsub.s32 4294967266, %v218
    %v224 = vadd.s32 %v223, 127
    %v225 = vshll.u32 %v224, 23
    %v226 = vor.u32 4788187, %v225
    %v227 = vand.u32 2147483647, %v226
    %v229 = vcvt.s32.f32 %v222
    %v230 = vmul.f32 %v229, %v227
    %v231 = vxor.u32 %v230, 2147483648
    %v232 = vsel %vm149, %v231, %v230
    %v233 = vsub.s32 4, %v209
    %v234 = vsel %vm149, %v233, %v209
    %v235 = vsel %vm148, %v42, %v232
    %v236 = vsel %vm148, 0, %v234
    %v237 = vcosq.f32.pop %v235
    %v238 = vsinq.f32.pop %v235
    %vm239 = vweird.f32 %v42
    %v240 = vadd.s32 %v236, 3
    %v241 = vand.u32 %v240, 3
    %vm242 = vcmp.lt.s32.totalorder %v241, 2
    %vm243 = vcmp.eq.s32.totalorder %v241, 0
    %v244 = vxor.u32 %v238, 2147483648
    %v245 = vsel %vm243, %v237, %v244
    %vm246 = vcmp.eq.s32.totalorder %v241, 2
    %v247 = vxor.u32 %v237, 2147483648
    %v248 = vsel %vm246, %v247, %v238
    %v249 = vsel %vm242, %v245, %v248
    %v250 = vsel %vm239, nan, %v249
    %251 = vst [vmem:[#allocation6] sm:$0xff] %v250
    // Predicated region
    $region10: #{tpu_custom_call.1} parent=1 // pred_check
      _
    $region11: #{tpu_custom_call.1} parent=1 // pred_check_branch
      %253 = sbr.rel (0) target = $region13
    $region12: #{tpu_custom_call.1} parent=1 // pred_region
      %s255 = ssub.s32 128, 128
      %256 = vsyncadd [#allocation4], %s255
      %s258 = sshll.u32 [#allocation5], 4
      %s259 = int_to_ptr.vmem [resolvable:$true] %s258
      %261 = dma.vmem_to_hbm [thread:$0]  %s259, 128, %s1, [#allocation4]
    $region13: #{tpu_custom_call.1} parent=1 // pred_fallthru
      _
    // Predicated region
    $region14: #{tpu_custom_call.1} parent=1 // pred_check
      _
    $region15: #{tpu_custom_call.1} parent=1 // pred_check_branch
      %263 = sbr.rel (0) target = $region17
    $region16: #{tpu_custom_call.1} parent=1 // pred_region
      %s265 = ssub.s32 128, 128
      %266 = vsyncadd [#allocation7], %s265
      %s268 = sshll.u32 [#allocation6], 4
      %s269 = int_to_ptr.vmem [resolvable:$true] %s268
      %271 = dma.vmem_to_hbm [thread:$0]  %s269, 128, %s2, [#allocation7]
    $region17: #{tpu_custom_call.1} parent=1 // pred_fallthru
      _
    // Predicated region
    $region18: #{tpu_custom_call.1} parent=1 // pred_check
      _
    $region19: #{tpu_custom_call.1} parent=1 // pred_check_branch
      %273 = sbr.rel (0) target = $region21
    $region20: #{tpu_custom_call.1} parent=1 // pred_region
      %274 = dma.done [#allocation4], 128
    $region21: #{tpu_custom_call.1} parent=1 // pred_fallthru
      _
    // Predicated region
    $region22: #{tpu_custom_call.1} parent=1 // pred_check
      _
    $region23: #{tpu_custom_call.1} parent=1 // pred_check_branch
      %276 = sbr.rel (0) target = $region25
    $region24: #{tpu_custom_call.1} parent=1 // pred_region
      %277 = dma.done [#allocation7], 128
    $region25: #{tpu_custom_call.1} parent=1 // pred_fallthru
      _
    %278 = vsyncpa [#allocation3], 1
    %279 = vsyncpa [#allocation4], 1
    %280 = vsyncpa [#allocation7], 1

</llo_original>
